<compile_context>
chip_gen: v5e
topology: v5e:2x2
jax: 0.10.0
libtpu: 0.0.40
codegen_flags: <defaults>
</compile_context>

<pallas_src>
import functools
import re

import jax
import jax.numpy as jnp
from jax.experimental import pallas as pl
from jax.experimental.pallas import tpu as pltpu


# ----------------------------- hyper-params ---------------------------------
class params:  # stand-in for the undefined `params` object in the reference
    n_mol_components = 3
    n_dilation_conv_layers = 4
    n_dilation_cycles = 2


KC = 2  # causal_conv kernel_size (CausalConv1d(1, 1) omits it; 2 = standard WaveNet)
KB = 5  # residual-block conv kernel size (fixed in the reference)

# The reference formula pow(2, k) % (n_layers / n_cycles) produces dilation=0,
# which nn.Conv1d rejects; use the standard WaveNet dilation cycle instead.
_CYCLE = max(1, params.n_dilation_conv_layers // params.n_dilation_cycles)
DILATIONS = tuple(2 ** (k % _CYCLE) for k in range(params.n_dilation_conv_layers))

# packed parameter vector layout (all scalars, float32, in SMEM):
#   [KC causal-conv taps, causal bias]                                  -> KC+1
#   per block: [5 filt taps, filt b, 5 gate taps, gate b, res w, res b,
#               skip w, skip b]                                         -> 16
#   [conv_1 w, conv_1 b, conv_2 w, conv_2 b]                            -> 4
N_PARAMS = (KC + 1) + 16 * len(DILATIONS) + 4

# receptive field of the whole stack; halo rounded up to a full lane group
RF = (KC - 1) + sum((KB - 1) * d for d in DILATIONS)
HALO = 128
assert HALO >= RF, "halo must cover the receptive field"


# ------------------------------- kernel --------------------------------------
def wavenet_kernel(p_ref, x_ref, o_ref, *, compute_dtype):
    """x_ref: (R, HALO + T_TILE) independent rows; o_ref: (R, T_TILE)."""
    cdt = compute_dtype
    f32 = jnp.float32

    def shift_right(v, s):
        # Causal shift along lanes.  pltpu.roll wraps the last `s` lanes to the
        # front; that wrap only pollutes lanes < RF <= HALO, all of which sit
        # in the discarded halo prefix, so no mask / select is needed.
        if s == 0:
            return v
        return pltpu.roll(v, shift=s, axis=1)

    def tap(idx, neg=False):
        # Scalar weight in the block compute dtype (negation is a free scalar op).
        v = p_ref[idx]
        return (-v if neg else v).astype(cdt)

    x = x_ref[...]  # f32 window (R, W)

    # causal_conv (KC taps) — tiny next to the residual blocks, kept in f32
    p = 0
    h = p_ref[p] * shift_right(x, KC - 1)
    for i in range(1, KC):
        h = h + p_ref[p + i] * shift_right(x, KC - 1 - i)
    h = h + p_ref[p + KC]
    p += KC + 1

    skip = None
    skip_bias_idx = []
    for d in DILATIONS:
        pf = p            # filter taps / bias
        pg = p + KB + 1   # gate taps / bias (accumulated NEGATED — see sigmoid)
        hb = h.astype(cdt)                          # one cast per block
        # Fused filter/gate FIR: each shifted copy of h is built once (one roll)
        # and accumulated into BOTH branches; first tap seeds the accumulator.
        v = shift_right(hb, (KB - 1) * d)
        filt = tap(pf) * v
        gate = tap(pg, neg=True) * v
        for i in range(1, KB):
            v = shift_right(hb, (KB - 1 - i) * d)
            filt = filt + tap(pf + i) * v
            gate = gate + tap(pg + i, neg=True) * v
        filt = (filt + tap(pf + KB)).astype(f32)
        gate = (gate + tap(pg + KB, neg=True)).astype(f32)   # gate == -(gate preact)
        p = pg + KB + 1

        # gated activation: tanh(f) * sigmoid(g); sigmoid via exp + approx
        # reciprocal (both on the EUP).  gate already holds -g.
        sig = pl.reciprocal(1.0 + jnp.exp(gate), approx=True)
        z = jnp.tanh(filt) * sig                             # f32

        h = p_ref[p] * z + p_ref[p + 1] + h                  # 1x1 residual conv + skip-connection
        s_term = p_ref[p + 2] * z                            # 1x1 skip conv (bias folded below)
        skip = s_term if skip is None else skip + s_term
        skip_bias_idx.append(p + 3)
        p += 4

    skip_bias = p_ref[skip_bias_idx[0]]
    for idx in skip_bias_idx[1:]:
        skip_bias = skip_bias + p_ref[idx]                   # scalar adds (free)

    out = jnp.maximum(skip[:, HALO:] + skip_bias, 0.0)       # drop recomputed halo first
    out = p_ref[p] * out + p_ref[p + 1]                      # conv_1 (1x1)
    out = jnp.maximum(out, 0.0)
    out = p_ref[p + 2] * out + p_ref[p + 3]                  # conv_2 (1x1)
    o_ref[...] = out.astype(o_ref.dtype)


# ------------------------------- wrapper --------------------------------------
def _round_up(n, m):
    return -(-n // m) * m


def _tpu_generation():
    try:
        dev = jax.devices()[0]
        if dev.platform != "tpu":
            return 0
        digits = re.findall(r"\d+", dev.device_kind)
        return int(digits[0]) if digits else 0
    except Exception:
        return 0


def _launch(packed_params, windows, rows_per_tile, t_tile, compute_dtype,
            vmem_limit, cost):
    rows_pad, W = windows.shape
    kern = functools.partial(wavenet_kernel, compute_dtype=compute_dtype)
    return pl.pallas_call(
        kern,
        out_shape=jax.ShapeDtypeStruct((rows_pad, t_tile), jnp.float32),
        grid=(rows_pad // rows_per_tile,),
        in_specs=[
            pl.BlockSpec(memory_space=pltpu.MemorySpace.SMEM),    # packed scalar weights
            pl.BlockSpec((rows_per_tile, W), lambda i: (i, 0)),   # halo + payload rows
        ],
        out_specs=pl.BlockSpec((rows_per_tile, t_tile), lambda i: (i, 0)),
        compiler_params=pltpu.CompilerParams(
            dimension_semantics=("parallel",),
            vmem_limit_bytes=vmem_limit,
        ),
        cost_estimate=cost,
    )(packed_params, windows)


_BF16_KERNEL_OK = {"value": None}   # probed once per process


def _bf16_supported():
    if _BF16_KERNEL_OK["value"] is None:
        try:
            probe_p = jnp.zeros((N_PARAMS,), jnp.float32)
            probe_x = jnp.zeros((8, HALO + 128), jnp.float32)
            jax.block_until_ready(
                _launch(probe_p, probe_x, 8, 128, jnp.bfloat16, 32 * 2**20, None))
            _BF16_KERNEL_OK["value"] = True
        except Exception:
            _BF16_KERNEL_OK["value"] = False
    return _BF16_KERNEL_OK["value"]


def wavenet_forward(packed_params, inputs, targets=None, *, t_tile=None,
                    rows_per_tile=None, compute_dtype=None):
    """inputs: (B, 1, T) NCW float32 (matches PyTorch). targets unused in forward."""
    del targets  # unused by the reference forward
    B, C, T = inputs.shape
    assert C == 1
    x2d = inputs.reshape(B, T).astype(jnp.float32)

    gen = _tpu_generation()
    if compute_dtype is None:
        # bf16 VPU/EUP only on v6e / v7x; v5e and older stay f32.
        compute_dtype = jnp.bfloat16 if gen >= 6 else jnp.float32
    if compute_dtype == jnp.bfloat16 and not _bf16_supported():
        compute_dtype = jnp.float32   # bf16 lowering unavailable -> safe fallback
    use_bf16 = compute_dtype == jnp.bfloat16

    # --- time tiling (lane-dense, multiple of 128) + halo windows -------------
    if t_tile is None:
        t_tile = min(_round_up(T, 128), 2048 if gen >= 6 else 1024)
    t_tile = _round_up(t_tile, 128)
    T_pad = _round_up(T, t_tile)
    nT = T_pad // t_tile
    W = HALO + t_tile

    # TODO(synk): the windows materialization below costs ~2 extra HBM passes;
    # an element-offset (pl.Element) input BlockSpec over the padded array (or a
    # carried-state time-axis variant for short T) would remove it, but loses the
    # (batch, time-tile) -> sublane-row folding that keeps vregs full at small B.
    x_pad = jnp.pad(x2d, ((0, 0), (HALO, T_pad - T)))                 # (B, HALO + T_pad)
    cur = x_pad[:, HALO:].reshape(B, nT, t_tile)                      # tile payloads
    halo = x_pad[:, :T_pad].reshape(B, nT, t_tile)[:, :, :HALO]       # causal history of each tile
    windows = jnp.concatenate([halo, cur], axis=2).reshape(B * nT, W)

    # --- fold (batch, time-tile) into sublane rows so vregs are full ----------
    # bf16 packs 2 rows per vreg sublane pair, so it wants >=16 rows; f32 >=8.
    # Grow the fold (amortizes ~0.35us/step overhead) only while >=2 grid steps
    # remain (pipelining + v7x megacore) and row-padding waste stays small.
    num_rows = B * nT
    min_rows = 16 if use_bf16 else 8
    if rows_per_tile is None:
        rows_per_tile = min_rows
        for cand in (64, 32, 16):
            steps = -(-num_rows // cand)
            waste = steps * cand - num_rows
            if cand >= min_rows and steps >= 2 and waste * 8 <= num_rows:
                rows_per_tile = cand
                break
    rows_per_tile = max(min_rows, _round_up(rows_per_tile, 8))
    rows_pad = _round_up(num_rows, rows_per_tile)
    if rows_pad != num_rows:
        windows = jnp.pad(windows, ((0, rows_pad - num_rows), (0, 0)))

    # --- VMEM budget / cost hints ----------------------------------------------
    # Double-buffered blocks are <1 MiB even at 64 rows x 2176 lanes; a flat
    # 32 MiB limit leaves headroom for in-kernel intermediates and stays well
    # clear of v7x's 64 MiB physical VMEM.
    vmem_limit = 32 * 2**20
    n_elem = rows_pad * W
    nb = len(DILATIONS)
    cost = pl.CostEstimate(
        flops=int(n_elem * (2 * KC + nb * (4 * KB + 10) + 10)),
        transcendentals=int(n_elem * 3 * nb),
        bytes_accessed=int(rows_pad * W * 4 + rows_pad * t_tile * 4 + N_PARAMS * 4),
    )

    out_rows = _launch(packed_params, windows, rows_per_tile, t_tile,
                       compute_dtype, vmem_limit, cost)

    out2d = out_rows[:num_rows].reshape(B, T_pad)[:, :T]
    return out2d.reshape(B, 1, T)


# --------------------------- pure-JAX reference -------------------------------
def _ref_causal_conv(x, w, b, dilation):
    K = w.shape[0]
    pad = (K - 1) * dilation
    xp = jnp.pad(x, ((0, 0), (pad, 0)))
    y = jnp.zeros_like(x)
    for i in range(K):
        y = y + w[i] * xp[:, i * dilation: i * dilation + x.shape[1]]
    return y + b


def wavenet_reference(pp, inputs):
    B, _, T = inputs.shape
    x = inputs.reshape(B, T)
    p = 0
    h = _ref_causal_conv(x, pp[p:p + KC], pp[p + KC], 1)
    p += KC + 1
    skip = jnp.zeros_like(h)
    for d in DILATIONS:
        filt = _ref_causal_conv(h, pp[p:p + KB], pp[p + KB], d)
        p += KB + 1
        gate = _ref_causal_conv(h, pp[p:p + KB], pp[p + KB], d)
        p += KB + 1
        z = jnp.tanh(filt) * jax.nn.sigmoid(gate)
        res = pp[p] * z + pp[p + 1]
        p += 2
        skp = pp[p] * z + pp[p + 1]
        p += 2
        h = res + h
        skip = skip + skp
    out = jnp.maximum(skip, 0.0)
    out = pp[p] * out + pp[p + 1]
    p += 2
    out = jnp.maximum(out, 0.0)
    out = pp[p] * out + pp[p + 1]
    return out.reshape(B, 1, T)


# ---------------------------------- main --------------------------------------
if __name__ == "__main__":
    key = jax.random.PRNGKey(0)
    k_param, k_x, k_t = jax.random.split(key, 3)

    B, T = 2, 128
    packed_params = 0.2 * jax.random.normal(k_param, (N_PARAMS,), dtype=jnp.float32)
    inputs = jax.random.normal(k_x, (B, 1, T), dtype=jnp.float32)
    targets = jax.random.normal(k_t, (B, T), dtype=jnp.float32)  # unused by forward

    out = wavenet_forward(packed_params, inputs, targets)
    out = jax.block_until_ready(out)

    ref = wavenet_reference(packed_params, inputs)
    assert out.shape == (B, 1, T)
    # bf16-tap path (v6e/v7x) needs looser tolerances than the f32 path
    # (which itself uses the EUP approximate reciprocal for the sigmoid).
    loose = _tpu_generation() >= 6
    rtol, atol = (5e-2, 3e-2) if loose else (1e-2, 5e-3)
    assert jnp.allclose(out, ref, rtol=rtol, atol=atol), "mismatch vs reference"

    # TODO(synk): MixtureOfLogistics / t_conv_1 / t_conv_2 are defined in __init__
    # but never used in forward, so they are not implemented here.
    print("KERNEL_OK")
</pallas_src>

<mosaic_0001>
module attributes {stable_mosaic.version = 11 : i64} {
  func.func @wavenet_kernel(%arg0: i32, %arg1: memref<71xf32, #tpu.memory_space<smem>>, %arg2: memref<8x256xf32, #tpu.memory_space<vmem>>, %arg3: memref<8x128xf32, #tpu.memory_space<vmem>>) attributes {dimension_semantics = [#tpu.dimension_semantics<parallel>], iteration_bounds = array<i64: 1>, scalar_prefetch = 0 : i64, scratch_operands = 0 : i64, tpu.core_type = #tpu.core_type<tc>, window_params = [{transform_indices = @transform_0, window_bounds = array<i64: 71>}, {transform_indices = @transform_1, window_bounds = array<i64: 8, 256>}, {transform_indices = @transform_2, window_bounds = array<i64: 8, 128>}]} {
    %c0 = arith.constant 0 : index
    %c0_0 = arith.constant 0 : index
    %0 = vector.load %arg2[%c0, %c0_0] : memref<8x256xf32, #tpu.memory_space<vmem>>, vector<8x256xf32>
    %c0_1 = arith.constant 0 : index
    %1 = memref.load %arg1[%c0_1] : memref<71xf32, #tpu.memory_space<smem>>
    %c1_i32 = arith.constant 1 : i32
    %2 = tpu.dynamic_rotate %0 by %c1_i32 dim 1 : vector<8x256xf32>, i32 -> vector<8x256xf32>
    %3 = vector.broadcast %1 : f32 to vector<8x256xf32>
    %4 = arith.mulf %3, %2 : vector<8x256xf32>
    %c1 = arith.constant 1 : index
    %5 = memref.load %arg1[%c1] : memref<71xf32, #tpu.memory_space<smem>>
    %6 = vector.broadcast %5 : f32 to vector<8x256xf32>
    %7 = arith.mulf %6, %0 : vector<8x256xf32>
    %8 = arith.addf %4, %7 : vector<8x256xf32>
    %c2 = arith.constant 2 : index
    %9 = memref.load %arg1[%c2] : memref<71xf32, #tpu.memory_space<smem>>
    %10 = vector.broadcast %9 : f32 to vector<8x256xf32>
    %11 = arith.addf %8, %10 : vector<8x256xf32>
    %c4_i32 = arith.constant 4 : i32
    %12 = tpu.dynamic_rotate %11 by %c4_i32 dim 1 : vector<8x256xf32>, i32 -> vector<8x256xf32>
    %c3 = arith.constant 3 : index
    %13 = memref.load %arg1[%c3] : memref<71xf32, #tpu.memory_space<smem>>
    %14 = vector.broadcast %13 : f32 to vector<8x256xf32>
    %15 = arith.mulf %14, %12 : vector<8x256xf32>
    %c9 = arith.constant 9 : index
    %16 = memref.load %arg1[%c9] : memref<71xf32, #tpu.memory_space<smem>>
    %cst = arith.constant 0.000000e+00 : f32
    %17 = arith.subf %cst, %16 : f32
    %18 = vector.broadcast %17 : f32 to vector<8x256xf32>
    %19 = arith.mulf %18, %12 : vector<8x256xf32>
    %c3_i32 = arith.constant 3 : i32
    %20 = tpu.dynamic_rotate %11 by %c3_i32 dim 1 : vector<8x256xf32>, i32 -> vector<8x256xf32>
    %c4 = arith.constant 4 : index
    %21 = memref.load %arg1[%c4] : memref<71xf32, #tpu.memory_space<smem>>
    %22 = vector.broadcast %21 : f32 to vector<8x256xf32>
    %23 = arith.mulf %22, %20 : vector<8x256xf32>
    %24 = arith.addf %15, %23 : vector<8x256xf32>
    %c10 = arith.constant 10 : index
    %25 = memref.load %arg1[%c10] : memref<71xf32, #tpu.memory_space<smem>>
    %cst_2 = arith.constant 0.000000e+00 : f32
    %26 = arith.subf %cst_2, %25 : f32
    %27 = vector.broadcast %26 : f32 to vector<8x256xf32>
    %28 = arith.mulf %27, %20 : vector<8x256xf32>
    %29 = arith.addf %19, %28 : vector<8x256xf32>
    %c2_i32 = arith.constant 2 : i32
    %30 = tpu.dynamic_rotate %11 by %c2_i32 dim 1 : vector<8x256xf32>, i32 -> vector<8x256xf32>
    %c5 = arith.constant 5 : index
    %31 = memref.load %arg1[%c5] : memref<71xf32, #tpu.memory_space<smem>>
    %32 = vector.broadcast %31 : f32 to vector<8x256xf32>
    %33 = arith.mulf %32, %30 : vector<8x256xf32>
    %34 = arith.addf %24, %33 : vector<8x256xf32>
    %c11 = arith.constant 11 : index
    %35 = memref.load %arg1[%c11] : memref<71xf32, #tpu.memory_space<smem>>
    %cst_3 = arith.constant 0.000000e+00 : f32
    %36 = arith.subf %cst_3, %35 : f32
    %37 = vector.broadcast %36 : f32 to vector<8x256xf32>
    %38 = arith.mulf %37, %30 : vector<8x256xf32>
    %39 = arith.addf %29, %38 : vector<8x256xf32>
    %c1_i32_4 = arith.constant 1 : i32
    %40 = tpu.dynamic_rotate %11 by %c1_i32_4 dim 1 : vector<8x256xf32>, i32 -> vector<8x256xf32>
    %c6 = arith.constant 6 : index
    %41 = memref.load %arg1[%c6] : memref<71xf32, #tpu.memory_space<smem>>
    %42 = vector.broadcast %41 : f32 to vector<8x256xf32>
    %43 = arith.mulf %42, %40 : vector<8x256xf32>
    %44 = arith.addf %34, %43 : vector<8x256xf32>
    %c12 = arith.constant 12 : index
    %45 = memref.load %arg1[%c12] : memref<71xf32, #tpu.memory_space<smem>>
    %cst_5 = arith.constant 0.000000e+00 : f32
    %46 = arith.subf %cst_5, %45 : f32
    %47 = vector.broadcast %46 : f32 to vector<8x256xf32>
    %48 = arith.mulf %47, %40 : vector<8x256xf32>
    %49 = arith.addf %39, %48 : vector<8x256xf32>
    %c7 = arith.constant 7 : index
    %50 = memref.load %arg1[%c7] : memref<71xf32, #tpu.memory_space<smem>>
    %51 = vector.broadcast %50 : f32 to vector<8x256xf32>
    %52 = arith.mulf %51, %11 : vector<8x256xf32>
    %53 = arith.addf %44, %52 : vector<8x256xf32>
    %c13 = arith.constant 13 : index
    %54 = memref.load %arg1[%c13] : memref<71xf32, #tpu.memory_space<smem>>
    %cst_6 = arith.constant 0.000000e+00 : f32
    %55 = arith.subf %cst_6, %54 : f32
    %56 = vector.broadcast %55 : f32 to vector<8x256xf32>
    %57 = arith.mulf %56, %11 : vector<8x256xf32>
    %58 = arith.addf %49, %57 : vector<8x256xf32>
    %c8 = arith.constant 8 : index
    %59 = memref.load %arg1[%c8] : memref<71xf32, #tpu.memory_space<smem>>
    %60 = vector.broadcast %59 : f32 to vector<8x256xf32>
    %61 = arith.addf %53, %60 : vector<8x256xf32>
    %c14 = arith.constant 14 : index
    %62 = memref.load %arg1[%c14] : memref<71xf32, #tpu.memory_space<smem>>
    %cst_7 = arith.constant 0.000000e+00 : f32
    %63 = arith.subf %cst_7, %62 : f32
    %64 = vector.broadcast %63 : f32 to vector<8x256xf32>
    %65 = arith.addf %58, %64 : vector<8x256xf32>
    %66 = math.exp %65 : vector<8x256xf32>
    %cst_8 = arith.constant 1.000000e+00 : f32
    %67 = vector.broadcast %cst_8 : f32 to vector<8x256xf32>
    %68 = arith.addf %67, %66 : vector<8x256xf32>
    %69 = tpu.reciprocal %68 {approx = true} : vector<8x256xf32> -> vector<8x256xf32>
    %70 = math.tanh %61 : vector<8x256xf32>
    %71 = arith.mulf %70, %69 : vector<8x256xf32>
    %c15 = arith.constant 15 : index
    %72 = memref.load %arg1[%c15] : memref<71xf32, #tpu.memory_space<smem>>
    %73 = vector.broadcast %72 : f32 to vector<8x256xf32>
    %74 = arith.mulf %73, %71 : vector<8x256xf32>
    %c16 = arith.constant 16 : index
    %75 = memref.load %arg1[%c16] : memref<71xf32, #tpu.memory_space<smem>>
    %76 = vector.broadcast %75 : f32 to vector<8x256xf32>
    %77 = arith.addf %74, %76 : vector<8x256xf32>
    %78 = arith.addf %77, %11 : vector<8x256xf32>
    %c17 = arith.constant 17 : index
    %79 = memref.load %arg1[%c17] : memref<71xf32, #tpu.memory_space<smem>>
    %80 = vector.broadcast %79 : f32 to vector<8x256xf32>
    %81 = arith.mulf %80, %71 : vector<8x256xf32>
    %c8_i32 = arith.constant 8 : i32
    %82 = tpu.dynamic_rotate %78 by %c8_i32 dim 1 : vector<8x256xf32>, i32 -> vector<8x256xf32>
    %c19 = arith.constant 19 : index
    %83 = memref.load %arg1[%c19] : memref<71xf32, #tpu.memory_space<smem>>
    %84 = vector.broadcast %83 : f32 to vector<8x256xf32>
    %85 = arith.mulf %84, %82 : vector<8x256xf32>
    %c25 = arith.constant 25 : index
    %86 = memref.load %arg1[%c25] : memref<71xf32, #tpu.memory_space<smem>>
    %cst_9 = arith.constant 0.000000e+00 : f32
    %87 = arith.subf %cst_9, %86 : f32
    %88 = vector.broadcast %87 : f32 to vector<8x256xf32>
    %89 = arith.mulf %88, %82 : vector<8x256xf32>
    %c6_i32 = arith.constant 6 : i32
    %90 = tpu.dynamic_rotate %78 by %c6_i32 dim 1 : vector<8x256xf32>, i32 -> vector<8x256xf32>
    %c20 = arith.constant 20 : index
    %91 = memref.load %arg1[%c20] : memref<71xf32, #tpu.memory_space<smem>>
    %92 = vector.broadcast %91 : f32 to vector<8x256xf32>
    %93 = arith.mulf %92, %90 : vector<8x256xf32>
    %94 = arith.addf %85, %93 : vector<8x256xf32>
    %c26 = arith.constant 26 : index
    %95 = memref.load %arg1[%c26] : memref<71xf32, #tpu.memory_space<smem>>
    %cst_10 = arith.constant 0.000000e+00 : f32
    %96 = arith.subf %cst_10, %95 : f32
    %97 = vector.broadcast %96 : f32 to vector<8x256xf32>
    %98 = arith.mulf %97, %90 : vector<8x256xf32>
    %99 = arith.addf %89, %98 : vector<8x256xf32>
    %c4_i32_11 = arith.constant 4 : i32
    %100 = tpu.dynamic_rotate %78 by %c4_i32_11 dim 1 : vector<8x256xf32>, i32 -> vector<8x256xf32>
    %c21 = arith.constant 21 : index
    %101 = memref.load %arg1[%c21] : memref<71xf32, #tpu.memory_space<smem>>
    %102 = vector.broadcast %101 : f32 to vector<8x256xf32>
    %103 = arith.mulf %102, %100 : vector<8x256xf32>
    %104 = arith.addf %94, %103 : vector<8x256xf32>
    %c27 = arith.constant 27 : index
    %105 = memref.load %arg1[%c27] : memref<71xf32, #tpu.memory_space<smem>>
    %cst_12 = arith.constant 0.000000e+00 : f32
    %106 = arith.subf %cst_12, %105 : f32
    %107 = vector.broadcast %106 : f32 to vector<8x256xf32>
    %108 = arith.mulf %107, %100 : vector<8x256xf32>
    %109 = arith.addf %99, %108 : vector<8x256xf32>
    %c2_i32_13 = arith.constant 2 : i32
    %110 = tpu.dynamic_rotate %78 by %c2_i32_13 dim 1 : vector<8x256xf32>, i32 -> vector<8x256xf32>
    %c22 = arith.constant 22 : index
    %111 = memref.load %arg1[%c22] : memref<71xf32, #tpu.memory_space<smem>>
    %112 = vector.broadcast %111 : f32 to vector<8x256xf32>
    %113 = arith.mulf %112, %110 : vector<8x256xf32>
    %114 = arith.addf %104, %113 : vector<8x256xf32>
    %c28 = arith.constant 28 : index
    %115 = memref.load %arg1[%c28] : memref<71xf32, #tpu.memory_space<smem>>
    %cst_14 = arith.constant 0.000000e+00 : f32
    %116 = arith.subf %cst_14, %115 : f32
    %117 = vector.broadcast %116 : f32 to vector<8x256xf32>
    %118 = arith.mulf %117, %110 : vector<8x256xf32>
    %119 = arith.addf %109, %118 : vector<8x256xf32>
    %c23 = arith.constant 23 : index
    %120 = memref.load %arg1[%c23] : memref<71xf32, #tpu.memory_space<smem>>
    %121 = vector.broadcast %120 : f32 to vector<8x256xf32>
    %122 = arith.mulf %121, %78 : vector<8x256xf32>
    %123 = arith.addf %114, %122 : vector<8x256xf32>
    %c29 = arith.constant 29 : index
    %124 = memref.load %arg1[%c29] : memref<71xf32, #tpu.memory_space<smem>>
    %cst_15 = arith.constant 0.000000e+00 : f32
    %125 = arith.subf %cst_15, %124 : f32
    %126 = vector.broadcast %125 : f32 to vector<8x256xf32>
    %127 = arith.mulf %126, %78 : vector<8x256xf32>
    %128 = arith.addf %119, %127 : vector<8x256xf32>
    %c24 = arith.constant 24 : index
    %129 = memref.load %arg1[%c24] : memref<71xf32, #tpu.memory_space<smem>>
    %130 = vector.broadcast %129 : f32 to vector<8x256xf32>
    %131 = arith.addf %123, %130 : vector<8x256xf32>
    %c30 = arith.constant 30 : index
    %132 = memref.load %arg1[%c30] : memref<71xf32, #tpu.memory_space<smem>>
    %cst_16 = arith.constant 0.000000e+00 : f32
    %133 = arith.subf %cst_16, %132 : f32
    %134 = vector.broadcast %133 : f32 to vector<8x256xf32>
    %135 = arith.addf %128, %134 : vector<8x256xf32>
    %136 = math.exp %135 : vector<8x256xf32>
    %cst_17 = arith.constant 1.000000e+00 : f32
    %137 = vector.broadcast %cst_17 : f32 to vector<8x256xf32>
    %138 = arith.addf %137, %136 : vector<8x256xf32>
    %139 = tpu.reciprocal %138 {approx = true} : vector<8x256xf32> -> vector<8x256xf32>
    %140 = math.tanh %131 : vector<8x256xf32>
    %141 = arith.mulf %140, %139 : vector<8x256xf32>
    %c31 = arith.constant 31 : index
    %142 = memref.load %arg1[%c31] : memref<71xf32, #tpu.memory_space<smem>>
    %143 = vector.broadcast %142 : f32 to vector<8x256xf32>
    %144 = arith.mulf %143, %141 : vector<8x256xf32>
    %c32 = arith.constant 32 : index
    %145 = memref.load %arg1[%c32] : memref<71xf32, #tpu.memory_space<smem>>
    %146 = vector.broadcast %145 : f32 to vector<8x256xf32>
    %147 = arith.addf %144, %146 : vector<8x256xf32>
    %148 = arith.addf %147, %78 : vector<8x256xf32>
    %c33 = arith.constant 33 : index
    %149 = memref.load %arg1[%c33] : memref<71xf32, #tpu.memory_space<smem>>
    %150 = vector.broadcast %149 : f32 to vector<8x256xf32>
    %151 = arith.mulf %150, %141 : vector<8x256xf32>
    %152 = arith.addf %81, %151 : vector<8x256xf32>
    %c4_i32_18 = arith.constant 4 : i32
    %153 = tpu.dynamic_rotate %148 by %c4_i32_18 dim 1 : vector<8x256xf32>, i32 -> vector<8x256xf32>
    %c35 = arith.constant 35 : index
    %154 = memref.load %arg1[%c35] : memref<71xf32, #tpu.memory_space<smem>>
    %155 = vector.broadcast %154 : f32 to vector<8x256xf32>
    %156 = arith.mulf %155, %153 : vector<8x256xf32>
    %c41 = arith.constant 41 : index
    %157 = memref.load %arg1[%c41] : memref<71xf32, #tpu.memory_space<smem>>
    %cst_19 = arith.constant 0.000000e+00 : f32
    %158 = arith.subf %cst_19, %157 : f32
    %159 = vector.broadcast %158 : f32 to vector<8x256xf32>
    %160 = arith.mulf %159, %153 : vector<8x256xf32>
    %c3_i32_20 = arith.constant 3 : i32
    %161 = tpu.dynamic_rotate %148 by %c3_i32_20 dim 1 : vector<8x256xf32>, i32 -> vector<8x256xf32>
    %c36 = arith.constant 36 : index
    %162 = memref.load %arg1[%c36] : memref<71xf32, #tpu.memory_space<smem>>
    %163 = vector.broadcast %162 : f32 to vector<8x256xf32>
    %164 = arith.mulf %163, %161 : vector<8x256xf32>
    %165 = arith.addf %156, %164 : vector<8x256xf32>
    %c42 = arith.constant 42 : index
    %166 = memref.load %arg1[%c42] : memref<71xf32, #tpu.memory_space<smem>>
    %cst_21 = arith.constant 0.000000e+00 : f32
    %167 = arith.subf %cst_21, %166 : f32
    %168 = vector.broadcast %167 : f32 to vector<8x256xf32>
    %169 = arith.mulf %168, %161 : vector<8x256xf32>
    %170 = arith.addf %160, %169 : vector<8x256xf32>
    %c2_i32_22 = arith.constant 2 : i32
    %171 = tpu.dynamic_rotate %148 by %c2_i32_22 dim 1 : vector<8x256xf32>, i32 -> vector<8x256xf32>
    %c37 = arith.constant 37 : index
    %172 = memref.load %arg1[%c37] : memref<71xf32, #tpu.memory_space<smem>>
    %173 = vector.broadcast %172 : f32 to vector<8x256xf32>
    %174 = arith.mulf %173, %171 : vector<8x256xf32>
    %175 = arith.addf %165, %174 : vector<8x256xf32>
    %c43 = arith.constant 43 : index
    %176 = memref.load %arg1[%c43] : memref<71xf32, #tpu.memory_space<smem>>
    %cst_23 = arith.constant 0.000000e+00 : f32
    %177 = arith.subf %cst_23, %176 : f32
    %178 = vector.broadcast %177 : f32 to vector<8x256xf32>
    %179 = arith.mulf %178, %171 : vector<8x256xf32>
    %180 = arith.addf %170, %179 : vector<8x256xf32>
    %c1_i32_24 = arith.constant 1 : i32
    %181 = tpu.dynamic_rotate %148 by %c1_i32_24 dim 1 : vector<8x256xf32>, i32 -> vector<8x256xf32>
    %c38 = arith.constant 38 : index
    %182 = memref.load %arg1[%c38] : memref<71xf32, #tpu.memory_space<smem>>
    %183 = vector.broadcast %182 : f32 to vector<8x256xf32>
    %184 = arith.mulf %183, %181 : vector<8x256xf32>
    %185 = arith.addf %175, %184 : vector<8x256xf32>
    %c44 = arith.constant 44 : index
    %186 = memref.load %arg1[%c44] : memref<71xf32, #tpu.memory_space<smem>>
    %cst_25 = arith.constant 0.000000e+00 : f32
    %187 = arith.subf %cst_25, %186 : f32
    %188 = vector.broadcast %187 : f32 to vector<8x256xf32>
    %189 = arith.mulf %188, %181 : vector<8x256xf32>
    %190 = arith.addf %180, %189 : vector<8x256xf32>
    %c39 = arith.constant 39 : index
    %191 = memref.load %arg1[%c39] : memref<71xf32, #tpu.memory_space<smem>>
    %192 = vector.broadcast %191 : f32 to vector<8x256xf32>
    %193 = arith.mulf %192, %148 : vector<8x256xf32>
    %194 = arith.addf %185, %193 : vector<8x256xf32>
    %c45 = arith.constant 45 : index
    %195 = memref.load %arg1[%c45] : memref<71xf32, #tpu.memory_space<smem>>
    %cst_26 = arith.constant 0.000000e+00 : f32
    %196 = arith.subf %cst_26, %195 : f32
    %197 = vector.broadcast %196 : f32 to vector<8x256xf32>
    %198 = arith.mulf %197, %148 : vector<8x256xf32>
    %199 = arith.addf %190, %198 : vector<8x256xf32>
    %c40 = arith.constant 40 : index
    %200 = memref.load %arg1[%c40] : memref<71xf32, #tpu.memory_space<smem>>
    %201 = vector.broadcast %200 : f32 to vector<8x256xf32>
    %202 = arith.addf %194, %201 : vector<8x256xf32>
    %c46 = arith.constant 46 : index
    %203 = memref.load %arg1[%c46] : memref<71xf32, #tpu.memory_space<smem>>
    %cst_27 = arith.constant 0.000000e+00 : f32
    %204 = arith.subf %cst_27, %203 : f32
    %205 = vector.broadcast %204 : f32 to vector<8x256xf32>
    %206 = arith.addf %199, %205 : vector<8x256xf32>
    %207 = math.exp %206 : vector<8x256xf32>
    %cst_28 = arith.constant 1.000000e+00 : f32
    %208 = vector.broadcast %cst_28 : f32 to vector<8x256xf32>
    %209 = arith.addf %208, %207 : vector<8x256xf32>
    %210 = tpu.reciprocal %209 {approx = true} : vector<8x256xf32> -> vector<8x256xf32>
    %211 = math.tanh %202 : vector<8x256xf32>
    %212 = arith.mulf %211, %210 : vector<8x256xf32>
    %c47 = arith.constant 47 : index
    %213 = memref.load %arg1[%c47] : memref<71xf32, #tpu.memory_space<smem>>
    %214 = vector.broadcast %213 : f32 to vector<8x256xf32>
    %215 = arith.mulf %214, %212 : vector<8x256xf32>
    %c48 = arith.constant 48 : index
    %216 = memref.load %arg1[%c48] : memref<71xf32, #tpu.memory_space<smem>>
    %217 = vector.broadcast %216 : f32 to vector<8x256xf32>
    %218 = arith.addf %215, %217 : vector<8x256xf32>
    %219 = arith.addf %218, %148 : vector<8x256xf32>
    %c49 = arith.constant 49 : index
    %220 = memref.load %arg1[%c49] : memref<71xf32, #tpu.memory_space<smem>>
    %221 = vector.broadcast %220 : f32 to vector<8x256xf32>
    %222 = arith.mulf %221, %212 : vector<8x256xf32>
    %223 = arith.addf %152, %222 : vector<8x256xf32>
    %c8_i32_29 = arith.constant 8 : i32
    %224 = tpu.dynamic_rotate %219 by %c8_i32_29 dim 1 : vector<8x256xf32>, i32 -> vector<8x256xf32>
    %c51 = arith.constant 51 : index
    %225 = memref.load %arg1[%c51] : memref<71xf32, #tpu.memory_space<smem>>
    %226 = vector.broadcast %225 : f32 to vector<8x256xf32>
    %227 = arith.mulf %226, %224 : vector<8x256xf32>
    %c57 = arith.constant 57 : index
    %228 = memref.load %arg1[%c57] : memref<71xf32, #tpu.memory_space<smem>>
    %cst_30 = arith.constant 0.000000e+00 : f32
    %229 = arith.subf %cst_30, %228 : f32
    %230 = vector.broadcast %229 : f32 to vector<8x256xf32>
    %231 = arith.mulf %230, %224 : vector<8x256xf32>
    %c6_i32_31 = arith.constant 6 : i32
    %232 = tpu.dynamic_rotate %219 by %c6_i32_31 dim 1 : vector<8x256xf32>, i32 -> vector<8x256xf32>
    %c52 = arith.constant 52 : index
    %233 = memref.load %arg1[%c52] : memref<71xf32, #tpu.memory_space<smem>>
    %234 = vector.broadcast %233 : f32 to vector<8x256xf32>
    %235 = arith.mulf %234, %232 : vector<8x256xf32>
    %236 = arith.addf %227, %235 : vector<8x256xf32>
    %c58 = arith.constant 58 : index
    %237 = memref.load %arg1[%c58] : memref<71xf32, #tpu.memory_space<smem>>
    %cst_32 = arith.constant 0.000000e+00 : f32
    %238 = arith.subf %cst_32, %237 : f32
    %239 = vector.broadcast %238 : f32 to vector<8x256xf32>
    %240 = arith.mulf %239, %232 : vector<8x256xf32>
    %241 = arith.addf %231, %240 : vector<8x256xf32>
    %c4_i32_33 = arith.constant 4 : i32
    %242 = tpu.dynamic_rotate %219 by %c4_i32_33 dim 1 : vector<8x256xf32>, i32 -> vector<8x256xf32>
    %c53 = arith.constant 53 : index
    %243 = memref.load %arg1[%c53] : memref<71xf32, #tpu.memory_space<smem>>
    %244 = vector.broadcast %243 : f32 to vector<8x256xf32>
    %245 = arith.mulf %244, %242 : vector<8x256xf32>
    %246 = arith.addf %236, %245 : vector<8x256xf32>
    %c59 = arith.constant 59 : index
    %247 = memref.load %arg1[%c59] : memref<71xf32, #tpu.memory_space<smem>>
    %cst_34 = arith.constant 0.000000e+00 : f32
    %248 = arith.subf %cst_34, %247 : f32
    %249 = vector.broadcast %248 : f32 to vector<8x256xf32>
    %250 = arith.mulf %249, %242 : vector<8x256xf32>
    %251 = arith.addf %241, %250 : vector<8x256xf32>
    %c2_i32_35 = arith.constant 2 : i32
    %252 = tpu.dynamic_rotate %219 by %c2_i32_35 dim 1 : vector<8x256xf32>, i32 -> vector<8x256xf32>
    %c54 = arith.constant 54 : index
    %253 = memref.load %arg1[%c54] : memref<71xf32, #tpu.memory_space<smem>>
    %254 = vector.broadcast %253 : f32 to vector<8x256xf32>
    %255 = arith.mulf %254, %252 : vector<8x256xf32>
    %256 = arith.addf %246, %255 : vector<8x256xf32>
    %c60 = arith.constant 60 : index
    %257 = memref.load %arg1[%c60] : memref<71xf32, #tpu.memory_space<smem>>
    %cst_36 = arith.constant 0.000000e+00 : f32
    %258 = arith.subf %cst_36, %257 : f32
    %259 = vector.broadcast %258 : f32 to vector<8x256xf32>
    %260 = arith.mulf %259, %252 : vector<8x256xf32>
    %261 = arith.addf %251, %260 : vector<8x256xf32>
    %c55 = arith.constant 55 : index
    %262 = memref.load %arg1[%c55] : memref<71xf32, #tpu.memory_space<smem>>
    %263 = vector.broadcast %262 : f32 to vector<8x256xf32>
    %264 = arith.mulf %263, %219 : vector<8x256xf32>
    %265 = arith.addf %256, %264 : vector<8x256xf32>
    %c61 = arith.constant 61 : index
    %266 = memref.load %arg1[%c61] : memref<71xf32, #tpu.memory_space<smem>>
    %cst_37 = arith.constant 0.000000e+00 : f32
    %267 = arith.subf %cst_37, %266 : f32
    %268 = vector.broadcast %267 : f32 to vector<8x256xf32>
    %269 = arith.mulf %268, %219 : vector<8x256xf32>
    %270 = arith.addf %261, %269 : vector<8x256xf32>
    %c56 = arith.constant 56 : index
    %271 = memref.load %arg1[%c56] : memref<71xf32, #tpu.memory_space<smem>>
    %272 = vector.broadcast %271 : f32 to vector<8x256xf32>
    %273 = arith.addf %265, %272 : vector<8x256xf32>
    %c62 = arith.constant 62 : index
    %274 = memref.load %arg1[%c62] : memref<71xf32, #tpu.memory_space<smem>>
    %cst_38 = arith.constant 0.000000e+00 : f32
    %275 = arith.subf %cst_38, %274 : f32
    %276 = vector.broadcast %275 : f32 to vector<8x256xf32>
    %277 = arith.addf %270, %276 : vector<8x256xf32>
    %278 = math.exp %277 : vector<8x256xf32>
    %cst_39 = arith.constant 1.000000e+00 : f32
    %279 = vector.broadcast %cst_39 : f32 to vector<8x256xf32>
    %280 = arith.addf %279, %278 : vector<8x256xf32>
    %281 = tpu.reciprocal %280 {approx = true} : vector<8x256xf32> -> vector<8x256xf32>
    %282 = math.tanh %273 : vector<8x256xf32>
    %283 = arith.mulf %282, %281 : vector<8x256xf32>
    %c65 = arith.constant 65 : index
    %284 = memref.load %arg1[%c65] : memref<71xf32, #tpu.memory_space<smem>>
    %285 = vector.broadcast %284 : f32 to vector<8x256xf32>
    %286 = arith.mulf %285, %283 : vector<8x256xf32>
    %287 = arith.addf %223, %286 : vector<8x256xf32>
    %c18 = arith.constant 18 : index
    %288 = memref.load %arg1[%c18] : memref<71xf32, #tpu.memory_space<smem>>
    %c34 = arith.constant 34 : index
    %289 = memref.load %arg1[%c34] : memref<71xf32, #tpu.memory_space<smem>>
    %290 = arith.addf %288, %289 : f32
    %c50 = arith.constant 50 : index
    %291 = memref.load %arg1[%c50] : memref<71xf32, #tpu.memory_space<smem>>
    %292 = arith.addf %290, %291 : f32
    %c66 = arith.constant 66 : index
    %293 = memref.load %arg1[%c66] : memref<71xf32, #tpu.memory_space<smem>>
    %294 = arith.addf %292, %293 : f32
    %295 = vector.extract_strided_slice %287 {offsets = [0, 128], sizes = [8, 128], strides = [1, 1]} : vector<8x256xf32> to vector<8x128xf32>
    %296 = vector.broadcast %294 : f32 to vector<8x128xf32>
    %297 = arith.addf %295, %296 : vector<8x128xf32>
    %cst_40 = arith.constant 0.000000e+00 : f32
    %298 = vector.broadcast %cst_40 : f32 to vector<8x128xf32>
    %299 = arith.maximumf %297, %298 : vector<8x128xf32>
    %c67 = arith.constant 67 : index
    %300 = memref.load %arg1[%c67] : memref<71xf32, #tpu.memory_space<smem>>
    %301 = vector.broadcast %300 : f32 to vector<8x128xf32>
    %302 = arith.mulf %301, %299 : vector<8x128xf32>
    %c68 = arith.constant 68 : index
    %303 = memref.load %arg1[%c68] : memref<71xf32, #tpu.memory_space<smem>>
    %304 = vector.broadcast %303 : f32 to vector<8x128xf32>
    %305 = arith.addf %302, %304 : vector<8x128xf32>
    %cst_41 = arith.constant 0.000000e+00 : f32
    %306 = vector.broadcast %cst_41 : f32 to vector<8x128xf32>
    %307 = arith.maximumf %305, %306 : vector<8x128xf32>
    %c69 = arith.constant 69 : index
    %308 = memref.load %arg1[%c69] : memref<71xf32, #tpu.memory_space<smem>>
    %309 = vector.broadcast %308 : f32 to vector<8x128xf32>
    %310 = arith.mulf %309, %307 : vector<8x128xf32>
    %c70 = arith.constant 70 : index
    %311 = memref.load %arg1[%c70] : memref<71xf32, #tpu.memory_space<smem>>
    %312 = vector.broadcast %311 : f32 to vector<8x128xf32>
    %313 = arith.addf %310, %312 : vector<8x128xf32>
    %c0_42 = arith.constant 0 : index
    %c0_43 = arith.constant 0 : index
    %314 = vector.load %arg3[%c0_42, %c0_43] : memref<8x128xf32, #tpu.memory_space<vmem>>, vector<8x128xf32>
    tpu.vector_store %arg3[%c0_42, %c0_43], %313 {strides = array<i32>} : memref<8x128xf32, #tpu.memory_space<vmem>>, vector<8x128xf32>,
    return
  }
  func.func @transform_0(%arg0: i32) -> i32 {
    %c0_i32 = arith.constant 0 : i32
    %c0_i32_0 = arith.constant 0 : i32
    return %c0_i32 : i32
  }
  func.func @transform_1(%arg0: i32) -> (i32, i32) {
    %c0_i32 = arith.constant 0 : i32
    %c0_i32_0 = arith.constant 0 : i32
    return %arg0, %c0_i32 : i32, i32
  }
  func.func @transform_2(%arg0: i32) -> (i32, i32) {
    %c0_i32 = arith.constant 0 : i32
    %c0_i32_0 = arith.constant 0 : i32
    return %arg0, %c0_i32 : i32, i32
  }
}

</mosaic_0001>

<llo_original>
// kernel: tpu_custom_call.1
$region0: #{tpu_custom_call.1}
  #allocation0 [shape = 'u32[]', space=smem, size = 0x4, offset = 0x4, fixed_abs, tag = 'smem constant byte address 0x4 - core index']
  #allocation1 [shape = 'u32[72,128]{1,0:T(1,128)}', space=vmem, size = 0x9000, scoped, tag = 'internal scratch']
  %s0 = inlined_call_operand.hbm [shape: f32[71], index: 0, kind: input, shape index: {}]
  %s1 = inlined_call_operand.hbm [shape: f32[8,256], index: 1, kind: input, shape index: {}]
  %s2 = inlined_call_operand.hbm [shape: f32[8,128], index: 2, kind: output, shape index: {}]
  %s3 = sld [smem:[#allocation0]]
  $region26: #{tpu_custom_call.1} parent=0
    _
  %s5 = ssub.s32 1, %s3
  %s6 = scalar_select 0, %s5, %s3
  $region1: #{tpu_custom_call.1} parent=0
    #allocation2 [shape = 'u8[512]{0}', space=smem, size = 0x200, scoped, tag = 'input window, operand 0, single buffered']
    #allocation3 [shape = 's32[1]{0}', space=sflag, size = 0x4, scoped, tag = 'scoped memory for tpu_custom_call.1']
    #allocation4 [shape = 's32[1]{0}', space=sflag, size = 0x4, scoped, tag = 'scoped memory for tpu_custom_call.1']
    #allocation5 [shape = 's32[1]{0}', space=sflag, size = 0x4, scoped, tag = 'scoped memory for tpu_custom_call.1']
    #allocation6 [shape = 'u8[8192]{0}', space=vmem, size = 0x2000, scoped, tag = 'input window, operand 1, single buffered']
    #allocation7 [shape = 'u8[4096]{0}', space=vmem, size = 0x1000, scoped, tag = 'output window, operand 0, single buffered']
    %7 = vsyncpa [#allocation5], 0
    %8 = vsyncpa [#allocation3], 0
    %9 = vsyncpa [#allocation4], 0
    // Predicated region
    $region2: #{tpu_custom_call.1} parent=1 // pred_check
      _
    $region3: #{tpu_custom_call.1} parent=1 // pred_check_branch
      %11 = sbr.rel (0) target = $region5
    $region4: #{tpu_custom_call.1} parent=1 // pred_region
      %13 = vsyncadd [#allocation5], 0
      %s15 = sshll.u32 %s0, 4
      %s16 = int_to_ptr.hbm [resolvable:$true] %s15
      %18 = dma.hbm_to_smem %s16, 16, [#allocation2], [#allocation5]
    $region5: #{tpu_custom_call.1} parent=1 // pred_fallthru
      _
    // Predicated region
    $region6: #{tpu_custom_call.1} parent=1 // pred_check
      _
    $region7: #{tpu_custom_call.1} parent=1 // pred_check_branch
      %20 = sbr.rel (0) target = $region9
    $region8: #{tpu_custom_call.1} parent=1 // pred_region
      %22 = vsyncadd [#allocation3], 0
      %s24 = sshll.u32 %s1, 4
      %s25 = int_to_ptr.hbm [resolvable:$true] %s24
      %s26 = sshll.u32 [#allocation6], 4
      %s27 = int_to_ptr.vmem [resolvable:$true] %s26
      %29 = dma.hbm_to_vmem [thread:$0]  %s25, 256, %s27, [#allocation3]
    $region9: #{tpu_custom_call.1} parent=1 // pred_fallthru
      _
    // Predicated region
    $region10: #{tpu_custom_call.1} parent=1 // pred_check
      _
    $region11: #{tpu_custom_call.1} parent=1 // pred_check_branch
      %31 = sbr.rel (0) target = $region13
    $region12: #{tpu_custom_call.1} parent=1 // pred_region
      %33 = dma.done [#allocation5], 16
    $region13: #{tpu_custom_call.1} parent=1 // pred_fallthru
      _
    // Predicated region
    $region14: #{tpu_custom_call.1} parent=1 // pred_check
      _
    $region15: #{tpu_custom_call.1} parent=1 // pred_check_branch
      %35 = sbr.rel (0) target = $region17
    $region16: #{tpu_custom_call.1} parent=1 // pred_region
      %37 = dma.done [#allocation3], 256
    $region17: #{tpu_custom_call.1} parent=1 // pred_fallthru
      _
    %38 = sfence
    %v39 = vld [vmem:[#allocation6] sm:$0xff]
    %v40 = vld [vmem:[#allocation6 + $0x8] sm:$0xff]
    %s41 = sld [smem:[#allocation2]]
    %42 = vrot.lane.b32.xlu0 %v39, 1
    %v43 = vpop.permute.xlu0 %42
    %44 = vrot.lane.b32.xlu0 %v40, 1
    %v45 = vpop.permute.xlu0 %44
    %v46 = vlaneseq
    %v47 = vand.u32 %v46, 127
    %vm48 = vcmp.lt.s32.totalorder %v47, 1
    %v49 = vsel %vm48, %v43, %v45
    %v50 = vsel %vm48, %v45, %v43
    %v51 = vstv %s41
    %v52 = vmul.f32 %v51, %v50
    %v53 = vmul.f32 %v51, %v49
    %s54 = sld [smem:[#allocation2 + $0x1]]
    %v55 = vstv %s54
    %v56 = vmul.f32 %v55, %v39
    %v57 = vmul.f32 %v55, %v40
    %v58 = vadd.f32 %v52, %v56
    %v59 = vadd.f32 %v53, %v57
    %s60 = sld [smem:[#allocation2 + $0x2]]
    %v61 = vstv %s60
    %v62 = vadd.f32 %v58, %v61
    %v63 = vadd.f32 %v59, %v61
    %64 = vrot.lane.b32.xlu0 %v62, 4
    %v65 = vpop.permute.xlu0 %64
    %66 = vrot.lane.b32.xlu0 %v63, 4
    %v67 = vpop.permute.xlu0 %66
    %vm68 = vcmp.lt.s32.totalorder %v47, 4
    %v69 = vsel %vm68, %v65, %v67
    %v70 = vsel %vm68, %v67, %v65
    %s71 = sld [smem:[#allocation2 + $0x3]]
    %v72 = vstv %s71
    %v73 = vmul.f32 %v72, %v70
    %v74 = vmul.f32 %v72, %v69
    %s75 = sld [smem:[#allocation2 + $0x9]]
    %s76 = ssub.f32 0.0, %s75
    %v77 = vstv %s76
    %v78 = vmul.f32 %v77, %v70
    %v79 = vmul.f32 %v77, %v69
    %80 = vrot.lane.b32.xlu0 %v62, 3
    %v81 = vpop.permute.xlu0 %80
    %82 = vrot.lane.b32.xlu0 %v63, 3
    %v83 = vpop.permute.xlu0 %82
    %vm84 = vcmp.lt.s32.totalorder %v47, 3
    %v85 = vsel %vm84, %v81, %v83
    %v86 = vsel %vm84, %v83, %v81
    %s87 = sld [smem:[#allocation2 + $0x4]]
    %v88 = vstv %s87
    %v89 = vmul.f32 %v88, %v86
    %v90 = vmul.f32 %v88, %v85
    %v91 = vadd.f32 %v73, %v89
    %v92 = vadd.f32 %v74, %v90
    %s93 = sld [smem:[#allocation2 + $0xa]]
    %s94 = ssub.f32 0.0, %s93
    %v95 = vstv %s94
    %v96 = vmul.f32 %v95, %v86
    %v97 = vmul.f32 %v95, %v85
    %v98 = vadd.f32 %v78, %v96
    %v99 = vadd.f32 %v79, %v97
    %100 = vrot.lane.b32.xlu0 %v62, 2
    %v101 = vpop.permute.xlu0 %100
    %102 = vrot.lane.b32.xlu0 %v63, 2
    %v103 = vpop.permute.xlu0 %102
    %vm104 = vcmp.lt.s32.totalorder %v47, 2
    %v105 = vsel %vm104, %v101, %v103
    %v106 = vsel %vm104, %v103, %v101
    %s107 = sld [smem:[#allocation2 + $0x5]]
    %v108 = vstv %s107
    %v109 = vmul.f32 %v108, %v106
    %v110 = vmul.f32 %v108, %v105
    %v111 = vadd.f32 %v91, %v109
    %v112 = vadd.f32 %v92, %v110
    %s113 = sld [smem:[#allocation2 + $0xb]]
    %s114 = ssub.f32 0.0, %s113
    %v115 = vstv %s114
    %v116 = vmul.f32 %v115, %v106
    %v117 = vmul.f32 %v115, %v105
    %v118 = vadd.f32 %v98, %v116
    %v119 = vadd.f32 %v99, %v117
    %120 = vrot.lane.b32.xlu0 %v62, 1
    %v121 = vpop.permute.xlu0 %120
    %122 = vrot.lane.b32.xlu0 %v63, 1
    %v123 = vpop.permute.xlu0 %122
    %v124 = vsel %vm48, %v121, %v123
    %v125 = vsel %vm48, %v123, %v121
    %s126 = sld [smem:[#allocation2 + $0x6]]
    %v127 = vstv %s126
    %v128 = vmul.f32 %v127, %v125
    %v129 = vmul.f32 %v127, %v124
    %v130 = vadd.f32 %v111, %v128
    %v131 = vadd.f32 %v112, %v129
    %s132 = sld [smem:[#allocation2 + $0xc]]
    %s133 = ssub.f32 0.0, %s132
    %v134 = vstv %s133
    %v135 = vmul.f32 %v134, %v125
    %v136 = vmul.f32 %v134, %v124
    %v137 = vadd.f32 %v118, %v135
    %v138 = vadd.f32 %v119, %v136
    %s139 = sld [smem:[#allocation2 + $0x7]]
    %v140 = vstv %s139
    %v141 = vmul.f32 %v140, %v62
    %v142 = vmul.f32 %v140, %v63
    %v143 = vadd.f32 %v130, %v141
    %v144 = vadd.f32 %v131, %v142
    %s145 = sld [smem:[#allocation2 + $0xd]]
    %s146 = ssub.f32 0.0, %s145
    %v147 = vstv %s146
    %v148 = vmul.f32 %v147, %v62
    %v149 = vmul.f32 %v147, %v63
    %v150 = vadd.f32 %v137, %v148
    %v151 = vadd.f32 %v138, %v149
    %s152 = sld [smem:[#allocation2 + $0x8]]
    %v153 = vstv %s152
    %v154 = vadd.f32 %v143, %v153
    %v155 = vadd.f32 %v144, %v153
    %s156 = sld [smem:[#allocation2 + $0xe]]
    %s157 = ssub.f32 0.0, %s156
    %v158 = vstv %s157
    %v159 = vadd.f32 %v150, %v158
    %v160 = vadd.f32 %v151, %v158
    %v161 = vmul.f32 %v159, 1.442695
    %v162 = vpow.pop %v161
    %v163 = vmul.f32 %v160, 1.442695
    %v164 = vpow.pop %v163
    %v165 = vadd.f32 %v162, 1.0
    %v166 = vadd.f32 %v164, 1.0
    %v167 = vrcp.pop %v165
    %v168 = vrcp.pop %v166
    %v169 = vtanh.pop %v154
    %v170 = vtanh.pop %v155
    %v171 = vmul.f32 %v169, %v167
    %v172 = vmul.f32 %v170, %v168
    %s173 = sld [smem:[#allocation2 + $0xf]]
    %v174 = vstv %s173
    %v175 = vmul.f32 %v174, %v171
    %v176 = vmul.f32 %v174, %v172
    %s177 = sld [smem:[#allocation2 + $0x10]]
    %v178 = vstv %s177
    %v179 = vadd.f32 %v175, %v178
    %v180 = vadd.f32 %v176, %v178
    %v181 = vadd.f32 %v179, %v62
    %v182 = vadd.f32 %v180, %v63
    %s183 = sld [smem:[#allocation2 + $0x11]]
    %v184 = vstv %s183
    %v185 = vmul.f32 %v184, %v172
    %186 = vrot.lane.b32.xlu0 %v181, 8
    %v187 = vpop.permute.xlu0 %186
    %188 = vrot.lane.b32.xlu0 %v182, 8
    %v189 = vpop.permute.xlu0 %188
    %vm190 = vcmp.lt.s32.totalorder %v47, 8
    %v191 = vsel %vm190, %v187, %v189
    %v192 = vsel %vm190, %v189, %v187
    %s193 = sld [smem:[#allocation2 + $0x13]]
    %v194 = vstv %s193
    %v195 = vmul.f32 %v194, %v192
    %v196 = vmul.f32 %v194, %v191
    %s197 = sld [smem:[#allocation2 + $0x19]]
    %s198 = ssub.f32 0.0, %s197
    %v199 = vstv %s198
    %v200 = vmul.f32 %v199, %v192
    %v201 = vmul.f32 %v199, %v191
    %202 = vrot.lane.b32.xlu0 %v181, 6
    %v203 = vpop.permute.xlu0 %202
    %204 = vrot.lane.b32.xlu0 %v182, 6
    %v205 = vpop.permute.xlu0 %204
    %vm206 = vcmp.lt.s32.totalorder %v47, 6
    %v207 = vsel %vm206, %v203, %v205
    %v208 = vsel %vm206, %v205, %v203
    %s209 = sld [smem:[#allocation2 + $0x14]]
    %v210 = vstv %s209
    %v211 = vmul.f32 %v210, %v208
    %v212 = vmul.f32 %v210, %v207
    %v213 = vadd.f32 %v195, %v211
    %v214 = vadd.f32 %v196, %v212
    %s215 = sld [smem:[#allocation2 + $0x1a]]
    %s216 = ssub.f32 0.0, %s215
    %v217 = vstv %s216
    %v218 = vmul.f32 %v217, %v208
    %v219 = vmul.f32 %v217, %v207
    %v220 = vadd.f32 %v200, %v218
    %v221 = vadd.f32 %v201, %v219
    %222 = vrot.lane.b32.xlu0 %v181, 4
    %v223 = vpop.permute.xlu0 %222
    %224 = vrot.lane.b32.xlu0 %v182, 4
    %v225 = vpop.permute.xlu0 %224
    %v226 = vsel %vm68, %v223, %v225
    %v227 = vsel %vm68, %v225, %v223
    %s228 = sld [smem:[#allocation2 + $0x15]]
    %v229 = vstv %s228
    %v230 = vmul.f32 %v229, %v227
    %v231 = vmul.f32 %v229, %v226
    %v232 = vadd.f32 %v213, %v230
    %v233 = vadd.f32 %v214, %v231
    %s234 = sld [smem:[#allocation2 + $0x1b]]
    %s235 = ssub.f32 0.0, %s234
    %v236 = vstv %s235
    %v237 = vmul.f32 %v236, %v227
    %v238 = vmul.f32 %v236, %v226
    %v239 = vadd.f32 %v220, %v237
    %v240 = vadd.f32 %v221, %v238
    %241 = vrot.lane.b32.xlu0 %v181, 2
    %v242 = vpop.permute.xlu0 %241
    %243 = vrot.lane.b32.xlu0 %v182, 2
    %v244 = vpop.permute.xlu0 %243
    %v245 = vsel %vm104, %v242, %v244
    %v246 = vsel %vm104, %v244, %v242
    %s247 = sld [smem:[#allocation2 + $0x16]]
    %v248 = vstv %s247
    %v249 = vmul.f32 %v248, %v246
    %v250 = vmul.f32 %v248, %v245
    %v251 = vadd.f32 %v232, %v249
    %v252 = vadd.f32 %v233, %v250
    %s253 = sld [smem:[#allocation2 + $0x1c]]
    %s254 = ssub.f32 0.0, %s253
    %v255 = vstv %s254
    %v256 = vmul.f32 %v255, %v246
    %v257 = vmul.f32 %v255, %v245
    %v258 = vadd.f32 %v239, %v256
    %v259 = vadd.f32 %v240, %v257
    %s260 = sld [smem:[#allocation2 + $0x17]]
    %v261 = vstv %s260
    %v262 = vmul.f32 %v261, %v181
    %v263 = vmul.f32 %v261, %v182
    %v264 = vadd.f32 %v251, %v262
    %v265 = vadd.f32 %v252, %v263
    %s266 = sld [smem:[#allocation2 + $0x1d]]
    %s267 = ssub.f32 0.0, %s266
    %v268 = vstv %s267
    %v269 = vmul.f32 %v268, %v181
    %v270 = vmul.f32 %v268, %v182
    %v271 = vadd.f32 %v258, %v269
    %v272 = vadd.f32 %v259, %v270
    %s273 = sld [smem:[#allocation2 + $0x18]]
    %v274 = vstv %s273
    %v275 = vadd.f32 %v264, %v274
    %v276 = vadd.f32 %v265, %v274
    %s277 = sld [smem:[#allocation2 + $0x1e]]
    %s278 = ssub.f32 0.0, %s277
    %v279 = vstv %s278
    %v280 = vadd.f32 %v271, %v279
    %v281 = vadd.f32 %v272, %v279
    %v282 = vmul.f32 %v280, 1.442695
    %v283 = vpow.pop %v282
    %v284 = vmul.f32 %v281, 1.442695
    %v285 = vpow.pop %v284
    %v286 = vadd.f32 %v283, 1.0
    %v287 = vadd.f32 %v285, 1.0
    %v288 = vrcp.pop %v286
    %v289 = vrcp.pop %v287
    %v290 = vtanh.pop %v275
    %v291 = vtanh.pop %v276
    %v292 = vmul.f32 %v290, %v288
    %v293 = vmul.f32 %v291, %v289
    %s294 = sld [smem:[#allocation2 + $0x1f]]
    %v295 = vstv %s294
    %v296 = vmul.f32 %v295, %v292
    %v297 = vmul.f32 %v295, %v293
    %s298 = sld [smem:[#allocation2 + $0x20]]
    %v299 = vstv %s298
    %v300 = vadd.f32 %v296, %v299
    %v301 = vadd.f32 %v297, %v299
    %v302 = vadd.f32 %v300, %v181
    %v303 = vadd.f32 %v301, %v182
    %s304 = sld [smem:[#allocation2 + $0x21]]
    %v305 = vstv %s304
    %v306 = vmul.f32 %v305, %v293
    %v307 = vadd.f32 %v185, %v306
    %308 = vrot.lane.b32.xlu0 %v302, 4
    %v309 = vpop.permute.xlu0 %308
    %310 = vrot.lane.b32.xlu0 %v303, 4
    %v311 = vpop.permute.xlu0 %310
    %v312 = vsel %vm68, %v309, %v311
    %v313 = vsel %vm68, %v311, %v309
    %s314 = sld [smem:[#allocation2 + $0x23]]
    %v315 = vstv %s314
    %v316 = vmul.f32 %v315, %v313
    %v317 = vmul.f32 %v315, %v312
    %s318 = sld [smem:[#allocation2 + $0x29]]
    %s319 = ssub.f32 0.0, %s318
    %v320 = vstv %s319
    %v321 = vmul.f32 %v320, %v313
    %v322 = vmul.f32 %v320, %v312
    %323 = vrot.lane.b32.xlu0 %v302, 3
    %v324 = vpop.permute.xlu0 %323
    %325 = vrot.lane.b32.xlu0 %v303, 3
    %v326 = vpop.permute.xlu0 %325
    %v327 = vsel %vm84, %v324, %v326
    %v328 = vsel %vm84, %v326, %v324
    %s329 = sld [smem:[#allocation2 + $0x24]]
    %v330 = vstv %s329
    %v331 = vmul.f32 %v330, %v328
    %v332 = vmul.f32 %v330, %v327
    %v333 = vadd.f32 %v316, %v331
    %v334 = vadd.f32 %v317, %v332
    %s335 = sld [smem:[#allocation2 + $0x2a]]
    %s336 = ssub.f32 0.0, %s335
    %v337 = vstv %s336
    %v338 = vmul.f32 %v337, %v328
    %v339 = vmul.f32 %v337, %v327
    %v340 = vadd.f32 %v321, %v338
    %v341 = vadd.f32 %v322, %v339
    %342 = vrot.lane.b32.xlu0 %v302, 2
    %v343 = vpop.permute.xlu0 %342
    %344 = vrot.lane.b32.xlu0 %v303, 2
    %v345 = vpop.permute.xlu0 %344
    %v346 = vsel %vm104, %v343, %v345
    %v347 = vsel %vm104, %v345, %v343
    %s348 = sld [smem:[#allocation2 + $0x25]]
    %v349 = vstv %s348
    %v350 = vmul.f32 %v349, %v347
    %v351 = vmul.f32 %v349, %v346
    %v352 = vadd.f32 %v333, %v350
    %v353 = vadd.f32 %v334, %v351
    %s354 = sld [smem:[#allocation2 + $0x2b]]
    %s355 = ssub.f32 0.0, %s354
    %v356 = vstv %s355
    %v357 = vmul.f32 %v356, %v347
    %v358 = vmul.f32 %v356, %v346
    %v359 = vadd.f32 %v340, %v357
    %v360 = vadd.f32 %v341, %v358
    %361 = vrot.lane.b32.xlu0 %v302, 1
    %v362 = vpop.permute.xlu0 %361
    %363 = vrot.lane.b32.xlu0 %v303, 1
    %v364 = vpop.permute.xlu0 %363
    %v365 = vsel %vm48, %v362, %v364
    %v366 = vsel %vm48, %v364, %v362
    %s367 = sld [smem:[#allocation2 + $0x26]]
    %v368 = vstv %s367
    %v369 = vmul.f32 %v368, %v366
    %v370 = vmul.f32 %v368, %v365
    %v371 = vadd.f32 %v352, %v369
    %v372 = vadd.f32 %v353, %v370
    %s373 = sld [smem:[#allocation2 + $0x2c]]
    %s374 = ssub.f32 0.0, %s373
    %v375 = vstv %s374
    %v376 = vmul.f32 %v375, %v366
    %v377 = vmul.f32 %v375, %v365
    %v378 = vadd.f32 %v359, %v376
    %v379 = vadd.f32 %v360, %v377
    %s380 = sld [smem:[#allocation2 + $0x27]]
    %v381 = vstv %s380
    %v382 = vmul.f32 %v381, %v302
    %v383 = vmul.f32 %v381, %v303
    %v384 = vadd.f32 %v371, %v382
    %v385 = vadd.f32 %v372, %v383
    %s386 = sld [smem:[#allocation2 + $0x2d]]
    %s387 = ssub.f32 0.0, %s386
    %v388 = vstv %s387
    %v389 = vmul.f32 %v388, %v302
    %v390 = vmul.f32 %v388, %v303
    %v391 = vadd.f32 %v378, %v389
    %v392 = vadd.f32 %v379, %v390
    %s393 = sld [smem:[#allocation2 + $0x28]]
    %v394 = vstv %s393
    %v395 = vadd.f32 %v384, %v394
    %v396 = vadd.f32 %v385, %v394
    %s397 = sld [smem:[#allocation2 + $0x2e]]
    %s398 = ssub.f32 0.0, %s397
    %v399 = vstv %s398
    %v400 = vadd.f32 %v391, %v399
    %v401 = vadd.f32 %v392, %v399
    %v402 = vmul.f32 %v400, 1.442695
    %v403 = vpow.pop %v402
    %v404 = vmul.f32 %v401, 1.442695
    %v405 = vpow.pop %v404
    %v406 = vadd.f32 %v403, 1.0
    %v407 = vadd.f32 %v405, 1.0
    %v408 = vrcp.pop %v406
    %v409 = vrcp.pop %v407
    %v410 = vtanh.pop %v395
    %v411 = vtanh.pop %v396
    %v412 = vmul.f32 %v410, %v408
    %v413 = vmul.f32 %v411, %v409
    %s414 = sld [smem:[#allocation2 + $0x2f]]
    %v415 = vstv %s414
    %v416 = vmul.f32 %v415, %v412
    %v417 = vmul.f32 %v415, %v413
    %s418 = sld [smem:[#allocation2 + $0x30]]
    %v419 = vstv %s418
    %v420 = vadd.f32 %v416, %v419
    %v421 = vadd.f32 %v417, %v419
    %v422 = vadd.f32 %v420, %v302
    %v423 = vadd.f32 %v421, %v303
    %s424 = sld [smem:[#allocation2 + $0x31]]
    %v425 = vstv %s424
    %v426 = vmul.f32 %v425, %v413
    %v427 = vadd.f32 %v307, %v426
    %428 = vrot.lane.b32.xlu0 %v422, 8
    %v429 = vpop.permute.xlu0 %428
    %430 = vrot.lane.b32.xlu0 %v423, 8
    %v431 = vpop.permute.xlu0 %430
    %v432 = vsel %vm190, %v429, %v431
    %s433 = sld [smem:[#allocation2 + $0x33]]
    %v434 = vstv %s433
    %v435 = vmul.f32 %v434, %v432
    %s436 = sld [smem:[#allocation2 + $0x39]]
    %s437 = ssub.f32 0.0, %s436
    %v438 = vstv %s437
    %v439 = vmul.f32 %v438, %v432
    %440 = vrot.lane.b32.xlu0 %v422, 6
    %v441 = vpop.permute.xlu0 %440
    %442 = vrot.lane.b32.xlu0 %v423, 6
    %v443 = vpop.permute.xlu0 %442
    %v444 = vsel %vm206, %v441, %v443
    %s445 = sld [smem:[#allocation2 + $0x34]]
    %v446 = vstv %s445
    %v447 = vmul.f32 %v446, %v444
    %v448 = vadd.f32 %v435, %v447
    %s449 = sld [smem:[#allocation2 + $0x3a]]
    %s450 = ssub.f32 0.0, %s449
    %v451 = vstv %s450
    %v452 = vmul.f32 %v451, %v444
    %v453 = vadd.f32 %v439, %v452
    %454 = vrot.lane.b32.xlu0 %v422, 4
    %v455 = vpop.permute.xlu0 %454
    %456 = vrot.lane.b32.xlu0 %v423, 4
    %v457 = vpop.permute.xlu0 %456
    %v458 = vsel %vm68, %v455, %v457
    %s459 = sld [smem:[#allocation2 + $0x35]]
    %v460 = vstv %s459
    %v461 = vmul.f32 %v460, %v458
    %v462 = vadd.f32 %v448, %v461
    %s463 = sld [smem:[#allocation2 + $0x3b]]
    %s464 = ssub.f32 0.0, %s463
    %v465 = vstv %s464
    %v466 = vmul.f32 %v465, %v458
    %v467 = vadd.f32 %v453, %v466
    %468 = vrot.lane.b32.xlu0 %v422, 2
    %v469 = vpop.permute.xlu0 %468
    %470 = vrot.lane.b32.xlu0 %v423, 2
    %v471 = vpop.permute.xlu0 %470
    %v472 = vsel %vm104, %v469, %v471
    %s473 = sld [smem:[#allocation2 + $0x36]]
    %v474 = vstv %s473
    %v475 = vmul.f32 %v474, %v472
    %v476 = vadd.f32 %v462, %v475
    %s477 = sld [smem:[#allocation2 + $0x3c]]
    %s478 = ssub.f32 0.0, %s477
    %v479 = vstv %s478
    %v480 = vmul.f32 %v479, %v472
    %v481 = vadd.f32 %v467, %v480
    %s482 = sld [smem:[#allocation2 + $0x37]]
    %v483 = vstv %s482
    %v484 = vmul.f32 %v483, %v423
    %v485 = vadd.f32 %v476, %v484
    %s486 = sld [smem:[#allocation2 + $0x3d]]
    %s487 = ssub.f32 0.0, %s486
    %v488 = vstv %s487
    %v489 = vmul.f32 %v488, %v423
    %v490 = vadd.f32 %v481, %v489
    %s491 = sld [smem:[#allocation2 + $0x38]]
    %v492 = vstv %s491
    %v493 = vadd.f32 %v485, %v492
    %s494 = sld [smem:[#allocation2 + $0x3e]]
    %s495 = ssub.f32 0.0, %s494
    %v496 = vstv %s495
    %v497 = vadd.f32 %v490, %v496
    %v498 = vmul.f32 %v497, 1.442695
    %v499 = vpow.pop %v498
    %v500 = vadd.f32 %v499, 1.0
    %v501 = vrcp.pop %v500
    %v502 = vtanh.pop %v493
    %v503 = vmul.f32 %v502, %v501
    %s504 = sld [smem:[#allocation2 + $0x41]]
    %v505 = vstv %s504
    %v506 = vmul.f32 %v505, %v503
    %v507 = vadd.f32 %v427, %v506
    %s508 = sld [smem:[#allocation2 + $0x12]]
    %s509 = sld [smem:[#allocation2 + $0x22]]
    %s510 = sadd.f32 %s508, %s509
    %s511 = sld [smem:[#allocation2 + $0x32]]
    %s512 = sadd.f32 %s510, %s511
    %s513 = sld [smem:[#allocation2 + $0x42]]
    %s514 = sadd.f32 %s512, %s513
    %v515 = vstv %s514
    %v516 = vadd.f32 %v507, %v515
    %v517 = vmax.f32 %v516, 0.0
    %s518 = sld [smem:[#allocation2 + $0x43]]
    %v519 = vstv %s518
    %v520 = vmul.f32 %v519, %v517
    %s521 = sld [smem:[#allocation2 + $0x44]]
    %v522 = vstv %s521
    %v523 = vadd.f32 %v520, %v522
    %v524 = vmax.f32 %v523, 0.0
    %s525 = sld [smem:[#allocation2 + $0x45]]
    %v526 = vstv %s525
    %v527 = vmul.f32 %v526, %v524
    %s528 = sld [smem:[#allocation2 + $0x46]]
    %v529 = vstv %s528
    %v530 = vadd.f32 %v527, %v529
    %531 = vst [vmem:[#allocation7] sm:$0xff] %v530
    // Predicated region
    $region18: #{tpu_custom_call.1} parent=1 // pred_check
      _
    $region19: #{tpu_custom_call.1} parent=1 // pred_check_branch
      %533 = sbr.rel (0) target = $region21
    $region20: #{tpu_custom_call.1} parent=1 // pred_region
      %535 = vsyncadd [#allocation4], 0
      %s537 = sshll.u32 [#allocation7], 4
      %s538 = int_to_ptr.vmem [resolvable:$true] %s537
      %s539 = sshll.u32 %s2, 4
      %s540 = int_to_ptr.hbm [resolvable:$true] %s539
      %542 = dma.vmem_to_hbm [thread:$0]  %s538, 128, %s540, [#allocation4]
    $region21: #{tpu_custom_call.1} parent=1 // pred_fallthru
      _
    // Predicated region
    $region22: #{tpu_custom_call.1} parent=1 // pred_check
      _
    $region23: #{tpu_custom_call.1} parent=1 // pred_check_branch
      %544 = sbr.rel (0) target = $region25
    $region24: #{tpu_custom_call.1} parent=1 // pred_region
      %546 = dma.done [#allocation4], 128
    $region25: #{tpu_custom_call.1} parent=1 // pred_fallthru
      _
    %547 = vsyncpa [#allocation3], 1
    %548 = vsyncpa [#allocation4], 1
    %549 = vsyncpa [#allocation5], 1

</llo_original>
